<compile_context>
chip_gen: v7x
topology: tpu7x:2x2x1
jax: 0.10.0
libtpu: 0.0.40
codegen_flags: <defaults>
</compile_context>

<pallas_src>
import math

import jax
import jax.numpy as jnp
from jax import lax
from jax.experimental import pallas as pl
from jax.experimental.pallas import tpu as pltpu


# ----------------------------------------------------------------------------
# Kernels
# ----------------------------------------------------------------------------
def _proj_kernel_single_k(x_ref, w_ref, b_ref, o_ref):
    """Whole-K contraction: one MXU dot + fused bias, no accumulator scratch."""
    o_ref[...] = (
        jnp.dot(x_ref[...], w_ref[...], preferred_element_type=jnp.float32)
        + b_ref[...]
    ).astype(o_ref.dtype)


def _proj_kernel_k_loop(x_ref, w_ref, b_ref, o_ref, acc_ref):
    """K-tiled contraction: acc starts at the bias, finalize is cast+store."""

    @pl.when(pl.program_id(2) == 0)
    def _init():
        acc_ref[...] = pl.broadcast_to(b_ref[...], acc_ref.shape)

    acc_ref[...] += jnp.dot(
        x_ref[...], w_ref[...], preferred_element_type=jnp.float32
    )

    @pl.when(pl.program_id(2) == pl.num_programs(2) - 1)
    def _finalize():
        o_ref[...] = acc_ref[...].astype(o_ref.dtype)


# ----------------------------------------------------------------------------
# Wrapper helpers
# ----------------------------------------------------------------------------
def _sublane_align(dtype):
    # f32 -> 8, bf16 -> 16, int8/fp8 -> 32 (sub-32-bit dtypes pack sublanes).
    return {4: 8, 2: 16, 1: 32}.get(jnp.dtype(dtype).itemsize, 8)


def _round_up(v, m):
    return v + (-v) % m


def _default_tiles():
    """Per-generation MXU-native tile defaults."""
    try:
        kind = jax.devices()[0].device_kind.lower()
    except Exception:  # pragma: no cover - defensive
        kind = ""
    if "v5 lite" in kind or "v5lite" in kind or "v5e" in kind:
        # 4x128x128 MXU: 128-square output tiles; larger tk cuts re-fetch of x.
        return 128, 128, 1024
    # v6e / v7x: 2x256x256 MXU. 256-square tiles fill the systolic array and
    # halve grid-step count; bf16 256x512 blocks stay far under v7x's 64 MiB.
    return 256, 256, 512


def prepare_projection_params(weight, bias, compute_dtype=jnp.bfloat16):
    """One-time (parameter-load time) prep for the torch nn.Linear params.

    weight: (N, K) torch layout -> returns (K, N) in the MXU compute dtype.
    bias:   (N,)                -> returns (1, N) float32.
    Doing this once keeps the per-call wrapper free of weight copies.
    """
    w_kn = jnp.asarray(weight).T.astype(compute_dtype)
    b_row = jnp.asarray(bias).astype(jnp.float32).reshape(1, -1)
    return w_kn, b_row


def single_projection(x, w_kn, b_row, *, tm=None, tn=None, tk=None,
                      compute_dtype=jnp.bfloat16):
    """y = x @ w_kn + b  (eval-mode dropout = identity).

    x:     (..., K)
    w_kn:  (K, N) pre-transposed weight (see prepare_projection_params)
    b_row: (1, N) or (N,) bias (kept float32)
    returns (..., N) in x.dtype
    """
    *lead, K = x.shape
    Kw, N = w_kn.shape
    assert Kw == K, f"weight K {Kw} != x K {K}"
    M = int(math.prod(lead)) if lead else 1

    out_dtype = x.dtype
    # bf16 inputs for the MXU (accumulation stays f32); halves x/w DMA bytes.
    x2 = x.reshape(M, K).astype(compute_dtype)
    w = w_kn if w_kn.dtype == compute_dtype else w_kn.astype(compute_dtype)
    b = jnp.asarray(b_row).reshape(1, -1).astype(jnp.float32)

    dtm, dtn, dtk = _default_tiles()
    tm = dtm if tm is None else tm
    tn = dtn if tn is None else tn
    tk = dtk if tk is None else tk

    m_align = _sublane_align(compute_dtype)

    # ---- M (output rows / sublanes). Pad only when misaligned. -------------
    if M <= tm:
        Mp = M if M % m_align == 0 else _round_up(M, m_align)
        tm = Mp
    else:
        tm = _round_up(tm, m_align)
        Mp = _round_up(M, tm)
    # ---- N (output lanes). Pad only when not a multiple of 128. ------------
    if N <= tn:
        Np = N if N % 128 == 0 else _round_up(N, 128)
        tn = Np
    else:
        tn = _round_up(tn, 128)
        Np = _round_up(N, tn)
    # ---- K (contraction). Never pad when it fits a single tile; zero-pad
    #      (required for correctness) only in the multi-tile case. -----------
    if K <= tk:
        Kp = K
        tk = K
    else:
        tk = _round_up(tk, 128)
        Kp = _round_up(K, tk)

    if (Mp, Kp) != (M, K):
        x2 = jnp.pad(x2, ((0, Mp - M), (0, Kp - K)))
    if (Kp, Np) != (K, N):
        w = jnp.pad(w, ((0, Kp - K), (0, Np - N)))
    if Np != N:
        b = jnp.pad(b, ((0, 0), (0, Np - N)))

    n_k = Kp // tk
    if n_k == 1:
        # Single K tile: direct dot + fused bias, 2-D parallel grid,
        # no accumulator scratch.
        out = pl.pallas_call(
            _proj_kernel_single_k,
            out_shape=jax.ShapeDtypeStruct((Mp, Np), out_dtype),
            grid_spec=pltpu.PrefetchScalarGridSpec(
                num_scalar_prefetch=0,
                grid=(Mp // tm, Np // tn),
                in_specs=[
                    pl.BlockSpec((tm, tk), lambda i, j: (i, 0)),   # x tile
                    pl.BlockSpec((tk, tn), lambda i, j: (0, j)),   # w tile
                    pl.BlockSpec((1, tn), lambda i, j: (0, j)),    # bias tile
                ],
                out_specs=pl.BlockSpec((tm, tn), lambda i, j: (i, j)),
            ),
            compiler_params=pltpu.CompilerParams(
                dimension_semantics=("parallel", "parallel"),
            ),
        )(x2, w, b)
    else:
        # K-tiled reduction (K last in grid), f32 VMEM accumulator initialized
        # with the bias so the finalize step is just a cast + store.
        out = pl.pallas_call(
            _proj_kernel_k_loop,
            out_shape=jax.ShapeDtypeStruct((Mp, Np), out_dtype),
            grid_spec=pltpu.PrefetchScalarGridSpec(
                num_scalar_prefetch=0,
                grid=(Mp // tm, Np // tn, n_k),
                in_specs=[
                    pl.BlockSpec((tm, tk), lambda i, j, k: (i, k)),   # x tile
                    pl.BlockSpec((tk, tn), lambda i, j, k: (k, j)),   # w tile
                    pl.BlockSpec((1, tn), lambda i, j, k: (0, j)),    # bias
                ],
                out_specs=pl.BlockSpec((tm, tn), lambda i, j, k: (i, j)),
                scratch_shapes=[pltpu.VMEM((tm, tn), jnp.float32)],
            ),
            compiler_params=pltpu.CompilerParams(
                dimension_semantics=("parallel", "parallel", "arbitrary"),
            ),
        )(x2, w, b)

    if (Mp, Np) != (M, N):
        out = out[:M, :N]
    return out.reshape(*lead, N)


# ----------------------------------------------------------------------------
# Demo / correctness check
# ----------------------------------------------------------------------------
if __name__ == "__main__":
    # Shapes implied by the module: x = (batch, seq, continuousDim),
    # fc: continuousDim -> outputDim (outputDim chosen lane-dense = 128).
    continuous_dim = 32     # config.continuousDim (encodingDim)
    output_dim = 128        # config.outputDim
    batch, seq = 2, 8

    key = jax.random.PRNGKey(0)
    kx, kw, kb = jax.random.split(key, 3)
    x = jax.random.normal(kx, (batch, seq, continuous_dim), dtype=jnp.float32)
    weight = jax.random.normal(
        kw, (output_dim, continuous_dim), dtype=jnp.float32
    ) * (1.0 / math.sqrt(continuous_dim))
    bias = jax.random.normal(kb, (output_dim,), dtype=jnp.float32) * 0.5

    # Parameter prep happens once (parameter-load time), outside the hot path.
    w_kn, b_row = prepare_projection_params(weight, bias)

    out = single_projection(x, w_kn, b_row)
    out = jax.block_until_ready(out)

    # Reference: eval-mode forward, y = x @ W.T + b (dropout = identity).
    ref = (
        jnp.einsum("bsk,nk->bsn", x, weight, precision=lax.Precision.HIGHEST)
        + bias
    )
    assert out.shape == (batch, seq, output_dim)
    max_err = float(jnp.max(jnp.abs(out - ref)))
    assert jnp.allclose(out, ref, atol=5e-2, rtol=5e-2), (
        f"single-K path mismatch vs reference, max abs err = {max_err}"
    )

    # Also exercise the multi-K-tile (accumulator) path with a larger
    # encodingDim and an explicit small tk to force Kp // tk > 1.
    big_k = 1024
    kx2, kw2 = jax.random.split(kx, 2)
    x_big = jax.random.normal(kx2, (batch, seq, big_k), dtype=jnp.float32)
    w_big = jax.random.normal(
        kw2, (output_dim, big_k), dtype=jnp.float32
    ) * (1.0 / math.sqrt(big_k))
    w_big_kn, b_row2 = prepare_projection_params(w_big, bias)

    out_big = single_projection(x_big, w_big_kn, b_row2, tk=256)
    out_big = jax.block_until_ready(out_big)
    ref_big = (
        jnp.einsum("bsk,nk->bsn", x_big, w_big,
                   precision=lax.Precision.HIGHEST)
        + bias
    )
    max_err_big = float(jnp.max(jnp.abs(out_big - ref_big)))
    assert jnp.allclose(out_big, ref_big, atol=5e-2, rtol=5e-2), (
        f"multi-K path mismatch vs reference, max abs err = {max_err_big}"
    )

    print("KERNEL_OK")
</pallas_src>

<mosaic_0001>
module attributes {stable_mosaic.version = 11 : i64} {
  func.func @_proj_kernel_single_k(%arg0: i32, %arg1: i32, %arg2: memref<16x32xbf16, #tpu.memory_space<vmem>>, %arg3: memref<32x128xbf16, #tpu.memory_space<vmem>>, %arg4: memref<1x128xf32, #tpu.memory_space<vmem>>, %arg5: memref<16x128xf32, #tpu.memory_space<vmem>>) attributes {dimension_semantics = [#tpu.dimension_semantics<parallel>, #tpu.dimension_semantics<parallel>], iteration_bounds = array<i64: 1, 1>, scalar_prefetch = 0 : i64, scratch_operands = 0 : i64, tpu.core_type = #tpu.core_type<tc>, window_params = [{transform_indices = @transform_0, window_bounds = array<i64: 16, 32>}, {transform_indices = @transform_1, window_bounds = array<i64: 32, 128>}, {transform_indices = @transform_2, window_bounds = array<i64: 1, 128>}, {transform_indices = @transform_3, window_bounds = array<i64: 16, 128>}]} {
    %c0 = arith.constant 0 : index
    %c0_0 = arith.constant 0 : index
    %0 = vector.load %arg2[%c0, %c0_0] : memref<16x32xbf16, #tpu.memory_space<vmem>>, vector<16x32xbf16>
    %c0_1 = arith.constant 0 : index
    %c0_2 = arith.constant 0 : index
    %1 = vector.load %arg3[%c0_1, %c0_2] : memref<32x128xbf16, #tpu.memory_space<vmem>>, vector<32x128xbf16>
    %cst = arith.constant dense<0.000000e+00> : vector<16x128xf32>
    %2 = tpu.matmul %0, %1, %cst {dimension_numbers = #tpu.dot_dimension_numbers<[1], [0], [0], [1], [0, 0, 1, 1], [], []>} : vector<16x32xbf16>, vector<32x128xbf16>, vector<16x128xf32> -> vector<16x128xf32>
    %c0_3 = arith.constant 0 : index
    %c0_4 = arith.constant 0 : index
    %3 = vector.load %arg4[%c0_3, %c0_4] : memref<1x128xf32, #tpu.memory_space<vmem>>, vector<1x128xf32>
    %4 = vector.broadcast %3 : vector<1x128xf32> to vector<16x128xf32>
    %5 = arith.addf %2, %4 : vector<16x128xf32>
    %c0_5 = arith.constant 0 : index
    %c0_6 = arith.constant 0 : index
    %6 = vector.load %arg5[%c0_5, %c0_6] : memref<16x128xf32, #tpu.memory_space<vmem>>, vector<16x128xf32>
    tpu.vector_store %arg5[%c0_5, %c0_6], %5 {strides = array<i32>} : memref<16x128xf32, #tpu.memory_space<vmem>>, vector<16x128xf32>,
    return
  }
  func.func @transform_0(%arg0: i32, %arg1: i32) -> (i32, i32) {
    %c0_i32 = arith.constant 0 : i32
    %c0_i32_0 = arith.constant 0 : i32
    return %arg0, %c0_i32 : i32, i32
  }
  func.func @transform_1(%arg0: i32, %arg1: i32) -> (i32, i32) {
    %c0_i32 = arith.constant 0 : i32
    %c0_i32_0 = arith.constant 0 : i32
    return %c0_i32, %arg1 : i32, i32
  }
  func.func @transform_2(%arg0: i32, %arg1: i32) -> (i32, i32) {
    %c0_i32 = arith.constant 0 : i32
    %c0_i32_0 = arith.constant 0 : i32
    return %c0_i32, %arg1 : i32, i32
  }
  func.func @transform_3(%arg0: i32, %arg1: i32) -> (i32, i32) {
    %c0_i32 = arith.constant 0 : i32
    return %arg0, %arg1 : i32, i32
  }
}

</mosaic_0001>

<llo_original>
// kernel: tpu_custom_call.1
$region0: #{tpu_custom_call.1}
  #allocation0 [shape = 'u32[]', space=smem, size = 0x4, offset = 0x4, fixed_abs, tag = 'smem constant byte address 0x4 - core index']
  #allocation1 [shape = 'u32[144,128]{1,0:T(1,128)}', space=vmem, size = 0x12000, scoped, tag = 'internal scratch']
  %s0 = inlined_call_operand.hbm [shape: bf16[16,32], index: 0, kind: input, shape index: {}]
  %s1 = inlined_call_operand.hbm [shape: bf16[32,128], index: 1, kind: input, shape index: {}]
  %s2 = inlined_call_operand.vmem [shape: f32[1,128], index: 2, kind: input, shape index: {}]
  %s3 = inlined_call_operand.hbm [shape: f32[16,128], index: 3, kind: output, shape index: {}]
  %s4 = sld [smem:[#allocation0]]
  $region30: #{tpu_custom_call.1} parent=0
    _
  %s6 = ssub.s32 1, %s4
  %s7 = scalar_select 0, %s6, %s4
  $region1: #{tpu_custom_call.1} parent=0
    #allocation2 [shape = 'u8[4096]{0}', space=vmem, size = 0x1000, scoped, tag = 'input window, operand 0, single buffered']
    #allocation3 [shape = 's32[1]{0}', space=sflag, size = 0x4, scoped, tag = 'scoped memory for tpu_custom_call.1']
    #allocation4 [shape = 's32[1]{0}', space=sflag, size = 0x4, scoped, tag = 'scoped memory for tpu_custom_call.1']
    #allocation5 [shape = 'u8[8192]{0}', space=vmem, size = 0x2000, scoped, tag = 'input window, operand 1, single buffered']
    #allocation6 [shape = 's32[1]{0}', space=sflag, size = 0x4, scoped, tag = 'scoped memory for tpu_custom_call.1']
    #allocation7 [shape = 'u8[8192]{0}', space=vmem, size = 0x2000, scoped, tag = 'output window, operand 0, single buffered']
    %8 = vsyncpa [#allocation3], 0
    %9 = vsyncpa [#allocation6], 0
    %10 = vsyncpa [#allocation4], 0
    // Predicated region
    $region2: #{tpu_custom_call.1} parent=1 // pred_check
      _
    $region3: #{tpu_custom_call.1} parent=1 // pred_check_branch
      %12 = sbr.rel (0) target = $region5
    $region4: #{tpu_custom_call.1} parent=1 // pred_region
      %s14 = ssub.s32 128, 128
      %15 = vsyncadd [#allocation3], %s14
      %s16 = sshll.u32 [#allocation2], 4
      %s17 = int_to_ptr.vmem [resolvable:$true] %s16
      %22 = dma.hbm_to_vmem [thread:$0]  %s0, 128, %s17, [#allocation3], 64, 64, 4
    $region5: #{tpu_custom_call.1} parent=1 // pred_fallthru
      _
    // Predicated region
    $region6: #{tpu_custom_call.1} parent=1 // pred_check
      _
    $region7: #{tpu_custom_call.1} parent=1 // pred_check_branch
      %24 = sbr.rel (0) target = $region9
    $region8: #{tpu_custom_call.1} parent=1 // pred_region
      %s26 = ssub.s32 256, 256
      %27 = vsyncadd [#allocation6], %s26
      %s28 = sshll.u32 [#allocation5], 4
      %s29 = int_to_ptr.vmem [resolvable:$true] %s28
      %34 = dma.hbm_to_vmem [thread:$0]  %s1, 256, %s29, [#allocation6], 64, 64, 4
    $region9: #{tpu_custom_call.1} parent=1 // pred_fallthru
      _
    // Predicated region
    $region10: #{tpu_custom_call.1} parent=1 // pred_check
      _
    $region11: #{tpu_custom_call.1} parent=1 // pred_check_branch
      %36 = sbr.rel (0) target = $region13
    $region12: #{tpu_custom_call.1} parent=1 // pred_region
      _
    $region13: #{tpu_custom_call.1} parent=1 // pred_fallthru
      _
    // Predicated region
    $region14: #{tpu_custom_call.1} parent=1 // pred_check
      _
    $region15: #{tpu_custom_call.1} parent=1 // pred_check_branch
      %38 = sbr.rel (0) target = $region17
    $region16: #{tpu_custom_call.1} parent=1 // pred_region
      %39 = dma.done [#allocation3], 128
    $region17: #{tpu_custom_call.1} parent=1 // pred_fallthru
      _
    // Predicated region
    $region18: #{tpu_custom_call.1} parent=1 // pred_check
      _
    $region19: #{tpu_custom_call.1} parent=1 // pred_check_branch
      %41 = sbr.rel (0) target = $region21
    $region20: #{tpu_custom_call.1} parent=1 // pred_region
      %42 = dma.done [#allocation6], 256
    $region21: #{tpu_custom_call.1} parent=1 // pred_fallthru
      _
    %v44 = vld [vmem:[#allocation2] sm:$0xf]
    %v45 = vld [vmem:[#allocation2 + $0x4] sm:$0xf]
    %v46 = vld [vmem:[#allocation5] sm:$0xf]
    %v47 = vld [vmem:[#allocation5 + $0x4] sm:$0xf]
    %v48 = vld [vmem:[#allocation5 + $0x8] sm:$0xf]
    %v49 = vld [vmem:[#allocation5 + $0xc] sm:$0xf]
    %v50 = vld [vmem:[%s2] sm:$0x1]
    %v52 = vlaneseq
    %v53 = vshrl.u32 %v52, 7
    %v54 = vsub.s32 0, %v53
    %v55 = vrot.slane %v50, %v54
    %v59 = vunpack.c.l.b16 %v44
    %v60 = vunpack.c.l.b16 %v45
    %v61 = vpack.c.b16 %v60, %v59
    %v66 = vunpack.c.l.b16 %v46
    %v67 = vunpack.c.l.b16 %v47
    %v68 = vunpack.c.l.b16 %v48
    %v69 = vunpack.c.l.b16 %v49
    %v70 = vpack.c.b16 %v67, %v66
    %v71 = vpack.c.b16 %v69, %v68
    %vm74 = vcmask 261120
    %v76 = vsel %vm74, %v61, 0
    %78 = vmatprep.subr.bf16.mxu0 0
    %79 = vmatpush1.bf16.msra.mxu0 %v70
    %80 = vmatprep.subr.bf16.mxu0 0
    %81 = vmatpush1.bf16.msra.mxu0 %v71
    %82 = vmatprep.subr.bf16.mxu0 0
    %83 = vmatpush1.bf16.msra.mxu0 0
    %84 = vmatprep.subr.bf16.mxu0 0
    %85 = vmatpush1.bf16.msra.mxu0 0
    %86 = vmatprep.subr.bf16.mxu0 0
    %87 = vmatpush1.bf16.msra.mxu0 0
    %88 = vmatprep.subr.bf16.mxu0 0
    %89 = vmatpush1.bf16.msra.mxu0 0
    %90 = vmatprep.subr.bf16.mxu0 0
    %91 = vmatpush1.bf16.msra.mxu0 0
    %92 = vmatprep.subr.bf16.mxu0 0
    %93 = vmatpush1.bf16.msra.mxu0 0
    %94 = vmatprep.subr.bf16.mxu0 0
    %95 = vmatpush1.bf16.msra.mxu0 0
    %96 = vmatprep.subr.bf16.mxu0 0
    %97 = vmatpush1.bf16.msra.mxu0 0
    %98 = vmatprep.subr.bf16.mxu0 0
    %99 = vmatpush1.bf16.msra.mxu0 0
    %100 = vmatprep.subr.bf16.mxu0 0
    %101 = vmatpush1.bf16.msra.mxu0 0
    %102 = vmatprep.subr.bf16.mxu0 0
    %103 = vmatpush1.bf16.msra.mxu0 0
    %104 = vmatprep.subr.bf16.mxu0 0
    %105 = vmatpush1.bf16.msra.mxu0 0
    %106 = vmatprep.subr.bf16.mxu0 0
    %107 = vmatpush1.bf16.msra.mxu0 0
    %108 = vmatprep.subr.bf16.mxu0 0
    %109 = vmatpush1.bf16.msra.mxu0 0
    %110 = vmatprep.mubr.bf16.mxu0 0
    %111 = vmatmul.mubr.bf16.gmra.mrb[0].mxu0 %v76
    %v112 = vpop.f32.mrb[0].mxu0
    %v113 = vadd.f32 %v55, %v112
    %v114 = vpop.f32.mrb[0].mxu0
    %v115 = vpop.f32.mrb[0].mxu0
    %v116 = vadd.f32 %v55, %v115
    %v117 = vpop.f32.mrb[0].mxu0
    %118 = vdwg.mxu0
    %119 = vst [vmem:[#allocation7] sm:$0xff] %v113
    %120 = vst [vmem:[#allocation7 + $0x8] sm:$0xff] %v116
    // Predicated region
    $region22: #{tpu_custom_call.1} parent=1 // pred_check
      _
    $region23: #{tpu_custom_call.1} parent=1 // pred_check_branch
      %122 = sbr.rel (0) target = $region25
    $region24: #{tpu_custom_call.1} parent=1 // pred_region
      %s124 = ssub.s32 256, 256
      %125 = vsyncadd [#allocation4], %s124
      %s126 = sshll.u32 [#allocation7], 4
      %s127 = int_to_ptr.vmem [resolvable:$true] %s126
      %132 = dma.vmem_to_hbm [thread:$0]  %s127, 256, %s3, [#allocation4], 128, 128, 8
    $region25: #{tpu_custom_call.1} parent=1 // pred_fallthru
      _
    // Predicated region
    $region26: #{tpu_custom_call.1} parent=1 // pred_check
      _
    $region27: #{tpu_custom_call.1} parent=1 // pred_check_branch
      %134 = sbr.rel (0) target = $region29
    $region28: #{tpu_custom_call.1} parent=1 // pred_region
      %135 = dma.done [#allocation4], 256
    $region29: #{tpu_custom_call.1} parent=1 // pred_fallthru
      _
    %136 = vsyncpa [#allocation3], 1
    %137 = vsyncpa [#allocation6], 1
    %138 = vsyncpa [#allocation4], 1

</llo_original>
